<compile_context>
chip_gen: v7x
topology: tpu7x:2x2x1
jax: 0.10.0
libtpu: 0.0.40
codegen_flags: <defaults>
</compile_context>

<pallas_src>
import functools

import jax
import jax.numpy as jnp
from jax.experimental import pallas as pl
from jax.experimental.pallas import tpu as pltpu

HIDDEN = 20
OUT_DIM = 6
OUT_PAD = 8          # output features padded to a full sublane group (dense store)
NUM_LAYERS = 4       # module default -> 5 Linear layers total

# (out, in) dims of the 5 Linear layers, PyTorch weight layout.
LAYER_DIMS = [(HIDDEN, 1)] + [(HIDDEN, HIDDEN)] * (NUM_LAYERS - 1) + [(OUT_DIM, HIDDEN)]

# Packed-parameter layout: each layer occupies an 8-aligned row block of the
# packed array; columns 0:in_f hold W (out, in), column BIAS_COL holds b.
BIAS_COL = HIDDEN                      # 20
PACK_COLS = HIDDEN + 1                 # 21
_offs, _r = [], 0
for _out, _in in LAYER_DIMS:
    _offs.append(_r)
    _r += ((_out + 7) // 8) * 8        # pad each layer block to a multiple of 8 rows
LAYER_OFFSETS = tuple(_offs)           # (0, 24, 48, 72, 96)
PACK_ROWS = _r                         # 104


def _round_up(x, m):
    return ((x + m - 1) // m) * m


def _choose_block_m(n, target):
    """Lane-aligned tile; keep >=2 grid steps (v7x megacore) when batch allows."""
    target = max(128, _round_up(target, 128))
    if n <= 128:
        return 128
    half = max(128, _round_up((n + 1) // 2, 128))
    return min(target, half)


def _mlp_kernel(x_ref, p_ref, o_ref, *, use_bf16):
    x = x_ref[...]                                               # (1, block_m) f32
    mm_dtype = jnp.bfloat16 if use_bf16 else jnp.float32

    # Layer 0: Linear(1, 20) + tanh as a VPU broadcast outer product (K=1,
    # keep the degenerate contraction off the MXU).
    off0 = LAYER_OFFSETS[0]
    w0 = p_ref[pl.ds(off0, HIDDEN), pl.ds(0, 1)]                 # (20, 1)
    b0 = p_ref[pl.ds(off0, HIDDEN), pl.ds(BIAS_COL, 1)]          # (20, 1)
    h = jnp.tanh(w0 * x + b0)                                    # (20, block_m) f32

    # Hidden layers: (20,20) @ (20, block_m) on the MXU, f32 accumulation,
    # lane-dense output; optional bf16 inputs (v6e/v7x) cut MXU pass count.
    for off in LAYER_OFFSETS[1:NUM_LAYERS]:
        w = p_ref[pl.ds(off, HIDDEN), pl.ds(0, HIDDEN)]          # (20, 20)
        b = p_ref[pl.ds(off, HIDDEN), pl.ds(BIAS_COL, 1)]        # (20, 1)
        z = jnp.dot(w.astype(mm_dtype), h.astype(mm_dtype),
                    preferred_element_type=jnp.float32)
        h = jnp.tanh(z + b)

    # Output layer: Linear(20, 6) padded to 8 rows (rows 6:8 of W/b are zero
    # in the packed layout) -> fully dense (8, block_m) store, no activation.
    off4 = LAYER_OFFSETS[-1]
    w4 = p_ref[pl.ds(off4, OUT_PAD), pl.ds(0, HIDDEN)]           # (8, 20)
    b4 = p_ref[pl.ds(off4, OUT_PAD), pl.ds(BIAS_COL, 1)]         # (8, 1)
    o_ref[...] = (
        jnp.dot(w4.astype(mm_dtype), h.astype(mm_dtype),
                preferred_element_type=jnp.float32) + b4
    ).astype(o_ref.dtype)


def sihcrd_forward(x, packed_params, *, block_m=2048, use_bf16=False,
                   channels_first=False):
    """x: (N, 1) f32. packed_params: (PACK_ROWS, PACK_COLS) f32.

    Returns (N, 6) (or (6, N) channel-major if channels_first=True, which
    avoids any transpose and lets PINN residual code index channels directly).
    """
    n = x.shape[0]
    bm = _choose_block_m(n, block_m)
    n_pad = _round_up(n, bm)

    x_t = jnp.reshape(x.astype(jnp.float32), (1, n))             # batch on lanes
    if n_pad != n:
        x_t = jnp.pad(x_t, ((0, 0), (0, n_pad - n)))

    out_t = pl.pallas_call(
        functools.partial(_mlp_kernel, use_bf16=use_bf16),
        out_shape=jax.ShapeDtypeStruct((OUT_PAD, n_pad), jnp.float32),
        grid_spec=pltpu.PrefetchScalarGridSpec(
            num_scalar_prefetch=0,
            grid=(n_pad // bm,),
            in_specs=[
                pl.BlockSpec((1, bm), lambda i: (0, i)),
                # all params in one small resident full block, constant index
                pl.BlockSpec((PACK_ROWS, PACK_COLS), lambda i: (0, 0)),
            ],
            out_specs=pl.BlockSpec((OUT_PAD, bm), lambda i: (0, i)),
        ),
        compiler_params=pltpu.CompilerParams(
            dimension_semantics=("parallel",)),
    )(x_t, packed_params)

    out_t = out_t[:OUT_DIM, :n]                                  # drop pad rows/cols
    if channels_first:
        return out_t                                             # (6, N)
    return out_t.T                                               # (N, 6)


# jit the whole wrapper so the reshape/pad/slice/transpose fuse with the kernel
sihcrd_forward_jit = jax.jit(
    sihcrd_forward, static_argnames=("block_m", "use_bf16", "channels_first"))


def init_params(key):
    """Xavier-uniform (tanh gain 5/3) weights (out, in), zero biases."""
    gain = 5.0 / 3.0
    params = []
    for out_f, in_f in LAYER_DIMS:
        key, sub = jax.random.split(key)
        limit = gain * jnp.sqrt(6.0 / (in_f + out_f))
        w = jax.random.uniform(sub, (out_f, in_f), jnp.float32, -limit, limit)
        b = jnp.zeros((out_f,), jnp.float32)
        params.append((w, b))
    return params


def pack_params(params):
    packed = jnp.zeros((PACK_ROWS, PACK_COLS), jnp.float32)
    for (w, b), off in zip(params, LAYER_OFFSETS):
        out_f, in_f = w.shape
        packed = packed.at[off:off + out_f, 0:in_f].set(w)
        packed = packed.at[off:off + out_f, BIAS_COL].set(b)
    return packed


def reference_forward(x, params):
    h = x
    for w, b in params[:-1]:
        h = jnp.tanh(h @ w.T + b)
    w, b = params[-1]
    return h @ w.T + b


if __name__ == "__main__":
    key = jax.random.PRNGKey(0)
    params = init_params(key)
    packed = pack_params(params)

    # Aligned batch: block_m auto-capped to 256 -> 2-step "parallel" grid
    # (both v7x TensorCores busy; negligible extra overhead on v5e/v6e).
    key, sub = jax.random.split(key)
    x = jax.random.uniform(sub, (512, 1), jnp.float32)
    out = jax.block_until_ready(sihcrd_forward_jit(x, packed))
    ref = reference_forward(x, params)
    assert out.shape == (512, OUT_DIM)
    assert jnp.allclose(out, ref, atol=1e-4, rtol=1e-4), "mismatch vs JAX reference"

    # Ragged batch: padded inside the wrapper, result sliced back.
    key, sub = jax.random.split(key)
    x2 = jax.random.uniform(sub, (300, 1), jnp.float32)
    out2 = jax.block_until_ready(sihcrd_forward_jit(x2, packed))
    ref2 = reference_forward(x2, params)
    assert out2.shape == (300, OUT_DIM)
    assert jnp.allclose(out2, ref2, atol=1e-4, rtol=1e-4), "ragged-batch mismatch"

    # Channel-major output path (no transpose at all).
    out_cf = jax.block_until_ready(sihcrd_forward_jit(x, packed, channels_first=True))
    assert out_cf.shape == (OUT_DIM, 512)
    assert jnp.allclose(out_cf.T, ref, atol=1e-4, rtol=1e-4), "channels_first mismatch"

    # Optional bf16 matmul-input variant (v6e/v7x suggestion), loose tolerance.
    out_bf16 = jax.block_until_ready(sihcrd_forward_jit(x, packed, use_bf16=True))
    assert jnp.allclose(out_bf16, ref, atol=5e-2, rtol=5e-2), "bf16 variant mismatch"

    print("KERNEL_OK")
</pallas_src>

<mosaic_0001>
module attributes {stable_mosaic.version = 11 : i64} {
  func.func @_mlp_kernel(%arg0: i32, %arg1: memref<1x256xf32, #tpu.memory_space<vmem>>, %arg2: memref<104x21xf32, #tpu.memory_space<vmem>>, %arg3: memref<8x256xf32, #tpu.memory_space<vmem>>) attributes {dimension_semantics = [#tpu.dimension_semantics<parallel>], iteration_bounds = array<i64: 2>, scalar_prefetch = 0 : i64, scratch_operands = 0 : i64, tpu.core_type = #tpu.core_type<tc>, window_params = [{transform_indices = @transform_0, window_bounds = array<i64: 1, 256>}, {pipeline_mode = #tpu.pipeline_mode<synchronous>, transform_indices = @transform_1, window_bounds = array<i64: 104, 21>}, {transform_indices = @transform_2, window_bounds = array<i64: 8, 256>}]} {
    %c0 = arith.constant 0 : index
    %c0_0 = arith.constant 0 : index
    %0 = vector.load %arg1[%c0, %c0_0] : memref<1x256xf32, #tpu.memory_space<vmem>>, vector<1x256xf32>
    %c0_1 = arith.constant 0 : index
    %c0_2 = arith.constant 0 : index
    %1 = vector.load %arg2[%c0_1, %c0_2] : memref<104x21xf32, #tpu.memory_space<vmem>>, vector<20x1xf32>
    %c0_3 = arith.constant 0 : index
    %c20 = arith.constant 20 : index
    %2 = vector.load %arg2[%c0_3, %c20] : memref<104x21xf32, #tpu.memory_space<vmem>>, vector<20x1xf32>
    %3 = vector.broadcast %1 : vector<20x1xf32> to vector<20x256xf32>
    %4 = vector.broadcast %0 : vector<1x256xf32> to vector<20x256xf32>
    %5 = arith.mulf %3, %4 : vector<20x256xf32>
    %6 = vector.broadcast %2 : vector<20x1xf32> to vector<20x256xf32>
    %7 = arith.addf %5, %6 : vector<20x256xf32>
    %8 = math.tanh %7 : vector<20x256xf32>
    %c24 = arith.constant 24 : index
    %c0_4 = arith.constant 0 : index
    %9 = vector.load %arg2[%c24, %c0_4] : memref<104x21xf32, #tpu.memory_space<vmem>>, vector<20x20xf32>
    %c24_5 = arith.constant 24 : index
    %c20_6 = arith.constant 20 : index
    %10 = vector.load %arg2[%c24_5, %c20_6] : memref<104x21xf32, #tpu.memory_space<vmem>>, vector<20x1xf32>
    %cst = arith.constant dense<0.000000e+00> : vector<20x256xf32>
    %11 = tpu.matmul %9, %8, %cst {dimension_numbers = #tpu.dot_dimension_numbers<[1], [0], [0], [1], [0, 0, 1, 1], [], []>} : vector<20x20xf32>, vector<20x256xf32>, vector<20x256xf32> -> vector<20x256xf32>
    %12 = vector.broadcast %10 : vector<20x1xf32> to vector<20x256xf32>
    %13 = arith.addf %11, %12 : vector<20x256xf32>
    %14 = math.tanh %13 : vector<20x256xf32>
    %c48 = arith.constant 48 : index
    %c0_7 = arith.constant 0 : index
    %15 = vector.load %arg2[%c48, %c0_7] : memref<104x21xf32, #tpu.memory_space<vmem>>, vector<20x20xf32>
    %c48_8 = arith.constant 48 : index
    %c20_9 = arith.constant 20 : index
    %16 = vector.load %arg2[%c48_8, %c20_9] : memref<104x21xf32, #tpu.memory_space<vmem>>, vector<20x1xf32>
    %cst_10 = arith.constant dense<0.000000e+00> : vector<20x256xf32>
    %17 = tpu.matmul %15, %14, %cst_10 {dimension_numbers = #tpu.dot_dimension_numbers<[1], [0], [0], [1], [0, 0, 1, 1], [], []>} : vector<20x20xf32>, vector<20x256xf32>, vector<20x256xf32> -> vector<20x256xf32>
    %18 = vector.broadcast %16 : vector<20x1xf32> to vector<20x256xf32>
    %19 = arith.addf %17, %18 : vector<20x256xf32>
    %20 = math.tanh %19 : vector<20x256xf32>
    %c72 = arith.constant 72 : index
    %c0_11 = arith.constant 0 : index
    %21 = vector.load %arg2[%c72, %c0_11] : memref<104x21xf32, #tpu.memory_space<vmem>>, vector<20x20xf32>
    %c72_12 = arith.constant 72 : index
    %c20_13 = arith.constant 20 : index
    %22 = vector.load %arg2[%c72_12, %c20_13] : memref<104x21xf32, #tpu.memory_space<vmem>>, vector<20x1xf32>
    %cst_14 = arith.constant dense<0.000000e+00> : vector<20x256xf32>
    %23 = tpu.matmul %21, %20, %cst_14 {dimension_numbers = #tpu.dot_dimension_numbers<[1], [0], [0], [1], [0, 0, 1, 1], [], []>} : vector<20x20xf32>, vector<20x256xf32>, vector<20x256xf32> -> vector<20x256xf32>
    %24 = vector.broadcast %22 : vector<20x1xf32> to vector<20x256xf32>
    %25 = arith.addf %23, %24 : vector<20x256xf32>
    %26 = math.tanh %25 : vector<20x256xf32>
    %c96 = arith.constant 96 : index
    %c0_15 = arith.constant 0 : index
    %27 = vector.load %arg2[%c96, %c0_15] : memref<104x21xf32, #tpu.memory_space<vmem>>, vector<8x20xf32>
    %c96_16 = arith.constant 96 : index
    %c20_17 = arith.constant 20 : index
    %28 = vector.load %arg2[%c96_16, %c20_17] : memref<104x21xf32, #tpu.memory_space<vmem>>, vector<8x1xf32>
    %cst_18 = arith.constant dense<0.000000e+00> : vector<8x256xf32>
    %29 = tpu.matmul %27, %26, %cst_18 {dimension_numbers = #tpu.dot_dimension_numbers<[1], [0], [0], [1], [0, 0, 1, 1], [], []>} : vector<8x20xf32>, vector<20x256xf32>, vector<8x256xf32> -> vector<8x256xf32>
    %30 = vector.broadcast %28 : vector<8x1xf32> to vector<8x256xf32>
    %31 = arith.addf %29, %30 : vector<8x256xf32>
    %c0_19 = arith.constant 0 : index
    %c0_20 = arith.constant 0 : index
    %32 = vector.load %arg3[%c0_19, %c0_20] : memref<8x256xf32, #tpu.memory_space<vmem>>, vector<8x256xf32>
    tpu.vector_store %arg3[%c0_19, %c0_20], %31 {strides = array<i32>} : memref<8x256xf32, #tpu.memory_space<vmem>>, vector<8x256xf32>,
    return
  }
  func.func @transform_0(%arg0: i32) -> (i32, i32) {
    %c0_i32 = arith.constant 0 : i32
    %c0_i32_0 = arith.constant 0 : i32
    return %c0_i32, %arg0 : i32, i32
  }
  func.func @transform_1(%arg0: i32) -> (i32, i32) {
    %c0_i32 = arith.constant 0 : i32
    %c0_i32_0 = arith.constant 0 : i32
    %c0_i32_1 = arith.constant 0 : i32
    return %c0_i32, %c0_i32_0 : i32, i32
  }
  func.func @transform_2(%arg0: i32) -> (i32, i32) {
    %c0_i32 = arith.constant 0 : i32
    %c0_i32_0 = arith.constant 0 : i32
    return %c0_i32, %arg0 : i32, i32
  }
}

</mosaic_0001>

<llo_original>
// kernel: sihcrd_forward.1
$region0: #{sihcrd_forward.1}
  #allocation0 [shape = 'u32[]', space=smem, size = 0x4, offset = 0x4, fixed_abs, tag = 'smem constant byte address 0x4 - core index']
  #allocation1 [shape = 'u32[144,128]{1,0:T(1,128)}', space=vmem, size = 0x12000, scoped, tag = 'internal scratch']
  %s0 = inlined_call_operand.vmem [shape: f32[1,512], index: 0, kind: input, shape index: {}]
  %s1 = inlined_call_operand.vmem [shape: f32[104,21], index: 1, kind: input, shape index: {}]
  %s2 = inlined_call_operand.vmem [shape: f32[8,512], index: 2, kind: output, shape index: {}]
  %s3 = sld [smem:[#allocation0]]
  $region41: #{sihcrd_forward.1} parent=0
    _
  %s5 = ssub.s32 1, %s3
  %s6 = scalar_select 0, %s5, %s3
  loop: start=0, step=1, limit=4
  $region2: #{sihcrd_forward.1} parent=0 // loop_pre_header
    _
  $region3: #{sihcrd_forward.1} parent=0 // loop_header
    %s8 = sphi 0, %s12
    %p9 = scmp.ge.s32.totalorder %s8, 4
    %s18 = sphi 0, %s20
    %s21 = sphi 0, %s18
    %s22 = sphi 0, %s21
    %s38 = sphi 0, %s22
    %s42 = sphi 0, %s42
    %s44 = sphi 0, %s42
    %s45 = sphi 0, %s44
    %s59 = sphi 0, %s45
    %s65 = sphi 0, %s67
    %s68 = sphi 0, %s65
    %s69 = sphi 0, %s68
    %s85 = sphi 0, %s69
  $region4: #{sihcrd_forward.1} parent=0 // loop_header_branch
    %11 = sbr.rel (%p9) target = $region8
  $region5: #{sihcrd_forward.1} parent=0 // loop_body
    %s13 = ssub.s32 %s8, 1
    %s14 = ssub.s32 %s8, 2
    %s15 = sadd.s32 %s8, 1
    %s16 = ssub.s32 %s8, %s15
    %p17 = scmp.eq.s32.totalorder %s16, 0
    %s19 = sadd.s32 %s18, 1
    %s20 = scalar_select %p17, %s18, %s19
    %p23 = pneg %p17
    %p24 = scmp.eq.s32.totalorder %s8, 1
    %p25 = por %p23, %p24
    %p26 = scmp.ne.s32.totalorder %s18, %s21
    %p27 = scmp.eq.s32.totalorder %s8, 0
    %p28 = por %p26, %p27
    %p29 = scmp.ne.s32.totalorder %s18, %s21
    %p30 = scmp.eq.s32.totalorder %s13, 1
    %p31 = por %p29, %p30
    %p32 = scmp.ne.s32.totalorder %s21, %s22
    %p33 = scmp.eq.s32.totalorder %s13, 0
    %p34 = por %p32, %p33
    %p35 = scmp.ne.s32.totalorder %s21, %s22
    %p36 = scmp.eq.s32.totalorder %s14, 1
    %p37 = por %p35, %p36
    %p39 = scmp.ne.s32.totalorder %s22, %s38
    %p40 = scmp.eq.s32.totalorder %s14, 0
    %p41 = por %p39, %p40
    %s43 = sadd.s32 %s42, 1
    %p46 = scmp.eq.s32.totalorder %s8, 1
    %p47 = scmp.ne.s32.totalorder %s42, %s44
    %p48 = scmp.eq.s32.totalorder %s8, 0
    %p49 = por %p47, %p48
    %p50 = scmp.ne.s32.totalorder %s42, %s44
    %p51 = scmp.eq.s32.totalorder %s13, 1
    %p52 = por %p50, %p51
    %p53 = scmp.ne.s32.totalorder %s44, %s45
    %p54 = scmp.eq.s32.totalorder %s13, 0
    %p55 = por %p53, %p54
    %p56 = scmp.ne.s32.totalorder %s44, %s45
    %p57 = scmp.eq.s32.totalorder %s14, 1
    %p58 = por %p56, %p57
    %p60 = scmp.ne.s32.totalorder %s45, %s59
    %p61 = scmp.eq.s32.totalorder %s14, 0
    %p62 = por %p60, %p61
    %s63 = ssub.s32 %s8, %s15
    %p64 = scmp.eq.s32.totalorder %s63, 0
    %s66 = sadd.s32 %s65, 1
    %s67 = scalar_select %p64, %s65, %s66
    %p70 = pneg %p64
    %p71 = scmp.eq.s32.totalorder %s8, 1
    %p72 = por %p70, %p71
    %p73 = scmp.ne.s32.totalorder %s65, %s68
    %p74 = scmp.eq.s32.totalorder %s8, 0
    %p75 = por %p73, %p74
    %p76 = scmp.ne.s32.totalorder %s65, %s68
    %p77 = scmp.eq.s32.totalorder %s13, 1
    %p78 = por %p76, %p77
    %p79 = scmp.ne.s32.totalorder %s68, %s69
    %p80 = scmp.eq.s32.totalorder %s13, 0
    %p81 = por %p79, %p80
    %p82 = scmp.ne.s32.totalorder %s68, %s69
    %p83 = scmp.eq.s32.totalorder %s14, 1
    %p84 = por %p82, %p83
    %p86 = scmp.ne.s32.totalorder %s69, %s85
    %p87 = scmp.eq.s32.totalorder %s14, 0
    %p88 = por %p86, %p87
    %p89 = scmp.le.s32.totalorder 1, %s8
    %p90 = scmp.lt.s32.totalorder %s8, 3
    %p91 = pnand %p89, %p90
    %p92 = pneg %p91
    // Predicated region
    $region9: #{sihcrd_forward.1} parent=5 // pred_check
      _
    $region10: #{sihcrd_forward.1} parent=5 // pred_check_branch
      %94 = sbr.rel (%p91) target = $region12
    $region11: #{sihcrd_forward.1} parent=5 // pred_region
      %s95 = ssub.s32 %s8, 1
      // Predicated region
      $region13: #{sihcrd_forward.1} parent=11 // pred_check
        %p96 = pneg %p55
      $region14: #{sihcrd_forward.1} parent=11 // pred_check_branch
        %98 = sbr.rel (%p96) target = $region16
      $region15: #{sihcrd_forward.1} parent=11 // pred_region
        _
      $region16: #{sihcrd_forward.1} parent=11 // pred_fallthru
        _
    $region12: #{sihcrd_forward.1} parent=5 // pred_fallthru
      _
    %p99 = scmp.lt.s32.totalorder %s8, 2
    // Predicated region
    $region17: #{sihcrd_forward.1} parent=5 // pred_check
      %p100 = pneg %p99
    $region18: #{sihcrd_forward.1} parent=5 // pred_check_branch
      %102 = sbr.rel (%p100) target = $region20
    $region19: #{sihcrd_forward.1} parent=5 // pred_region
      // Predicated region
      $region21: #{sihcrd_forward.1} parent=19 // pred_check
        %p103 = pneg %p28
      $region22: #{sihcrd_forward.1} parent=19 // pred_check_branch
        %105 = sbr.rel (%p103) target = $region24
      $region23: #{sihcrd_forward.1} parent=19 // pred_region
        %s106 = smul.u32 2, %s8
        %p107 = scmp.lt.s32.totalorder %s106, 3
        %s108 = scalar_select %p107, %s106, 3
        %s109 = scalar_lea.vmem %s0, %s108
        %s110 = smul.u32 2, %s8
      $region24: #{sihcrd_forward.1} parent=19 // pred_fallthru
        _
    $region20: #{sihcrd_forward.1} parent=5 // pred_fallthru
      _
    %p111 = scmp.le.s32.totalorder 1, %s8
    %p112 = scmp.lt.s32.totalorder %s8, 3
    %p113 = pnand %p111, %p112
    %p114 = pneg %p113
    // Predicated region
    $region25: #{sihcrd_forward.1} parent=5 // pred_check
      _
    $region26: #{sihcrd_forward.1} parent=5 // pred_check_branch
      %116 = sbr.rel (%p113) target = $region28
    $region27: #{sihcrd_forward.1} parent=5 // pred_region
      %s117 = ssub.s32 %s8, 1
      %s118 = smul.u32 2, %s13
      %p119 = scmp.lt.s32.totalorder %s118, 3
      %s120 = scalar_select %p119, %s118, 3
      %s121 = scalar_lea.vmem %s0, %s120
      %p122 = pneg %p34
      %p123 = pneg %p31
      %p124 = pneg %p55
      %p125 = pneg %p52
      %p126 = pneg %p81
      %p127 = pneg %p78
      %s128 = smul.u32 2, %s13
      %p129 = scmp.lt.s32.totalorder %s128, 3
      %s130 = scalar_select %p129, %s128, 3
      %s131 = smul.addr %s130, 8
      %s132 = scalar_lea.vmem %s2, %s131
      %s133 = smul.u32 2, %s13
      %p134 = scmp.lt.s32.totalorder %s133, 3
      %s135 = scalar_select %p134, %s133, 3
      %s136 = scalar_lea.vmem %s0, %s135
      %s137 = smul.u32 2, %s13
      %s138 = smul.u32 2, %s13
      %p139 = scmp.lt.s32.totalorder %s138, 3
      %s140 = scalar_select %p139, %s138, 3
      %s141 = smul.addr %s140, 8
      %s142 = scalar_lea.vmem %s2, %s141
      %s143 = smul.u32 2, %s13
      %v144 = vld [vmem:[%s136] sm:$0x3]
      %v145 = vld [vmem:[%s1] sm:$0xff]
      %v146 = vld [vmem:[%s1 + $0x8] sm:$0xff]
      %v147 = vld [vmem:[%s1 + $0x10] sm:$0xf]
      %149 = vset.pattern.permute.xlu0 0
      %150 = vperm.xlu0 %149, %v145
      %v151 = vpop.permute.xlu0 %150
      %154 = vset.pattern.permute.xlu0 0
      %155 = vperm.xlu0 %154, %v146
      %v156 = vpop.permute.xlu0 %155
      %159 = vset.pattern.permute.xlu0 0
      %160 = vperm.xlu0 %159, %v147
      %v161 = vpop.permute.xlu0 %160
      %v164 = vlaneseq
      %v165 = vshrl.u32 %v164, 7
      %v166 = vsub.s32 0, %v165
      %v167 = vrot.slane %v144, %v166
      %v168 = vlaneseq
      %v169 = vshrl.u32 %v168, 7
      %v170 = vsub.s32 1, %v169
      %v171 = vrot.slane %v144, %v170
      %v174 = vmul.f32 %v151, %v167
      %v175 = vmul.f32 %v151, %v171
      %v176 = vmul.f32 %v156, %v167
      %v177 = vmul.f32 %v156, %v171
      %v178 = vmul.f32 %v161, %v167
      %v179 = vmul.f32 %v161, %v171
      %180 = vset.pattern.permute.xlu0 20
      %181 = vperm.xlu0 %180, %v145
      %v182 = vpop.permute.xlu0 %181
      %184 = vset.pattern.permute.xlu0 20
      %185 = vperm.xlu0 %184, %v146
      %v186 = vpop.permute.xlu0 %185
      %188 = vset.pattern.permute.xlu0 20
      %189 = vperm.xlu0 %188, %v147
      %v190 = vpop.permute.xlu0 %189
      %v192 = vadd.f32 %v174, %v182
      %v193 = vadd.f32 %v175, %v182
      %v194 = vadd.f32 %v176, %v186
      %v195 = vadd.f32 %v177, %v186
      %v196 = vadd.f32 %v178, %v190
      %v197 = vadd.f32 %v179, %v190
      %v198 = vtanh.pop %v192
      %v199 = vtanh.pop %v193
      %v200 = vtanh.pop %v194
      %v201 = vtanh.pop %v195
      %v202 = vtanh.pop %v196
      %v203 = vtanh.pop %v197
      %v204 = vld [vmem:[%s1 + $0x18] sm:$0xff]
      %v205 = vld [vmem:[%s1 + $0x20] sm:$0xff]
      %v206 = vld [vmem:[%s1 + $0x28] sm:$0xf]
      %208 = vset.pattern.permute.xlu0 20
      %209 = vperm.xlu0 %208, %v204
      %v210 = vpop.permute.xlu0 %209
      %213 = vset.pattern.permute.xlu0 20
      %214 = vperm.xlu0 %213, %v205
      %v215 = vpop.permute.xlu0 %214
      %218 = vset.pattern.permute.xlu0 20
      %219 = vperm.xlu0 %218, %v206
      %v220 = vpop.permute.xlu0 %219
      %vm222 = vcmask 162816
      %v223 = vsel %vm222, %v204, 0
      %v225 = vsel %vm222, %v205, 0
      %v227 = vsel %vm222, %v206, 0
      %vm229 = vcmask 1043456
      %v231 = vsel %vm229, %v202, 0
      %v234 = vsel %vm229, %v203, 0
      %236 = vmatprep.subr.mxu0 %v199
      %237 = vmatpush1.msra.mxu0 %v198
      %238 = vmatprep.subr.mxu0 %v201
      %239 = vmatpush1.msra.mxu0 %v200
      %240 = vmatprep.subr.mxu0 %v234
      %241 = vmatpush1.msra.mxu0 %v231
      %242 = vmatprep.subr.mxu0 0.0
      %243 = vmatpush1.msra.mxu0 0.0
      %244 = vmatprep.subr.mxu0 0.0
      %245 = vmatpush1.msra.mxu0 0.0
      %246 = vmatprep.subr.mxu0 0.0
      %247 = vmatpush1.msra.mxu0 0.0
      %248 = vmatprep.subr.mxu0 0.0
      %249 = vmatpush1.msra.mxu0 0.0
      %250 = vmatprep.subr.mxu0 0.0
      %251 = vmatpush1.msra.mxu0 0.0
      %252 = vmatprep.subr.mxu0 0.0
      %253 = vmatpush1.msra.mxu0 0.0
      %254 = vmatprep.subr.mxu0 0.0
      %255 = vmatpush1.msra.mxu0 0.0
      %256 = vmatprep.subr.mxu0 0.0
      %257 = vmatpush1.msra.mxu0 0.0
      %258 = vmatprep.subr.mxu0 0.0
      %259 = vmatpush1.msra.mxu0 0.0
      %260 = vmatprep.subr.mxu0 0.0
      %261 = vmatpush1.msra.mxu0 0.0
      %262 = vmatprep.subr.mxu0 0.0
      %263 = vmatpush1.msra.mxu0 0.0
      %264 = vmatprep.subr.mxu0 0.0
      %265 = vmatpush1.msra.mxu0 0.0
      %266 = vmatprep.subr.mxu0 0.0
      %267 = vmatpush1.msra.mxu0 0.0
      %268 = vmatprep.subr.mxu0 0.0
      %269 = vmatpush1.msra.mxu0 0.0
      %270 = vmatprep.subr.mxu0 0.0
      %271 = vmatpush1.msra.mxu0 0.0
      %272 = vmatprep.subr.mxu0 0.0
      %273 = vmatpush1.msra.mxu0 0.0
      %274 = vmatprep.subr.mxu0 0.0
      %275 = vmatpush1.msra.mxu0 0.0
      %276 = vmatprep.subr.mxu0 0.0
      %277 = vmatpush1.msra.mxu0 0.0
      %278 = vmatprep.subr.mxu0 0.0
      %279 = vmatpush1.msra.mxu0 0.0
      %280 = vmatprep.subr.mxu0 0.0
      %281 = vmatpush1.msra.mxu0 0.0
      %282 = vmatprep.subr.mxu0 0.0
      %283 = vmatpush1.msra.mxu0 0.0
      %284 = vmatprep.subr.mxu0 0.0
      %285 = vmatpush1.msra.mxu0 0.0
      %286 = vmatprep.subr.mxu0 0.0
      %287 = vmatpush1.msra.mxu0 0.0
      %288 = vmatprep.subr.mxu0 0.0
      %289 = vmatpush1.msra.mxu0 0.0
      %290 = vmatprep.subr.mxu0 0.0
      %291 = vmatpush1.msra.mxu0 0.0
      %292 = vmatprep.subr.mxu0 0.0
      %293 = vmatpush1.msra.mxu0 0.0
      %294 = vmatprep.subr.mxu0 0.0
      %295 = vmatpush1.msra.mxu0 0.0
      %296 = vmatprep.subr.mxu0 0.0
      %297 = vmatpush1.msra.mxu0 0.0
      %298 = vmatprep.subr.mxu0 0.0
      %299 = vmatpush1.msra.mxu0 0.0
      %300 = vmatprep.mubr.f32.mxu0 0.0
      %301 = vmatmul.mubr.f32.gmra.mrb[0].mxu0 %v223
      %v302 = vpop.f32.mrb[0].mxu0
      %v303 = vadd.f32 %v210, %v302
      %v304 = vpop.f32.mrb[0].mxu0
      %v305 = vadd.f32 %v210, %v304
      %306 = vmatprep.mubr.f32.mxu0 0.0
      %307 = vmatmul.mubr.f32.gmra.mrb[0].mxu0 %v225
      %v308 = vpop.f32.mrb[0].mxu0
      %v309 = vadd.f32 %v215, %v308
      %v310 = vpop.f32.mrb[0].mxu0
      %v311 = vadd.f32 %v215, %v310
      %312 = vmatprep.mubr.f32.mxu0 0.0
      %313 = vmatmul.mubr.f32.gmra.mrb[0].mxu0 %v227
      %v314 = vpop.f32.mrb[0].mxu0
      %v315 = vadd.f32 %v220, %v314
      %v316 = vpop.f32.mrb[0].mxu0
      %v317 = vadd.f32 %v220, %v316
      %318 = vdwg.mxu0
      %v319 = vtanh.pop %v303
      %v320 = vtanh.pop %v305
      %v321 = vtanh.pop %v309
      %v322 = vtanh.pop %v311
      %v323 = vtanh.pop %v315
      %v324 = vtanh.pop %v317
      %v325 = vld [vmem:[%s1 + $0x30] sm:$0xff]
      %v326 = vld [vmem:[%s1 + $0x38] sm:$0xff]
      %v327 = vld [vmem:[%s1 + $0x40] sm:$0xf]
      %329 = vset.pattern.permute.xlu0 20
      %330 = vperm.xlu0 %329, %v325
      %v331 = vpop.permute.xlu0 %330
      %334 = vset.pattern.permute.xlu0 20
      %335 = vperm.xlu0 %334, %v326
      %v336 = vpop.permute.xlu0 %335
      %339 = vset.pattern.permute.xlu0 20
      %340 = vperm.xlu0 %339, %v327
      %v341 = vpop.permute.xlu0 %340
      %v343 = vsel %vm222, %v325, 0
      %v345 = vsel %vm222, %v326, 0
      %v347 = vsel %vm222, %v327, 0
      %v350 = vsel %vm229, %v323, 0
      %v353 = vsel %vm229, %v324, 0
      %355 = vmatprep.subr.mxu0 %v320
      %356 = vmatpush1.msra.mxu0 %v319
      %357 = vmatprep.subr.mxu0 %v322
      %358 = vmatpush1.msra.mxu0 %v321
      %359 = vmatprep.subr.mxu0 %v353
      %360 = vmatpush1.msra.mxu0 %v350
      %361 = vmatprep.subr.mxu0 0.0
      %362 = vmatpush1.msra.mxu0 0.0
      %363 = vmatprep.subr.mxu0 0.0
      %364 = vmatpush1.msra.mxu0 0.0
      %365 = vmatprep.subr.mxu0 0.0
      %366 = vmatpush1.msra.mxu0 0.0
      %367 = vmatprep.subr.mxu0 0.0
      %368 = vmatpush1.msra.mxu0 0.0
      %369 = vmatprep.subr.mxu0 0.0
      %370 = vmatpush1.msra.mxu0 0.0
      %371 = vmatprep.subr.mxu0 0.0
      %372 = vmatpush1.msra.mxu0 0.0
      %373 = vmatprep.subr.mxu0 0.0
      %374 = vmatpush1.msra.mxu0 0.0
      %375 = vmatprep.subr.mxu0 0.0
      %376 = vmatpush1.msra.mxu0 0.0
      %377 = vmatprep.subr.mxu0 0.0
      %378 = vmatpush1.msra.mxu0 0.0
      %379 = vmatprep.subr.mxu0 0.0
      %380 = vmatpush1.msra.mxu0 0.0
      %381 = vmatprep.subr.mxu0 0.0
      %382 = vmatpush1.msra.mxu0 0.0
      %383 = vmatprep.subr.mxu0 0.0
      %384 = vmatpush1.msra.mxu0 0.0
      %385 = vmatprep.subr.mxu0 0.0
      %386 = vmatpush1.msra.mxu0 0.0
      %387 = vmatprep.subr.mxu0 0.0
      %388 = vmatpush1.msra.mxu0 0.0
      %389 = vmatprep.subr.mxu0 0.0
      %390 = vmatpush1.msra.mxu0 0.0
      %391 = vmatprep.subr.mxu0 0.0
      %392 = vmatpush1.msra.mxu0 0.0
      %393 = vmatprep.subr.mxu0 0.0
      %394 = vmatpush1.msra.mxu0 0.0
      %395 = vmatprep.subr.mxu0 0.0
      %396 = vmatpush1.msra.mxu0 0.0
      %397 = vmatprep.subr.mxu0 0.0
      %398 = vmatpush1.msra.mxu0 0.0
      %399 = vmatprep.subr.mxu0 0.0
      %400 = vmatpush1.msra.mxu0 0.0
      %401 = vmatprep.subr.mxu0 0.0
      %402 = vmatpush1.msra.mxu0 0.0
      %403 = vmatprep.subr.mxu0 0.0
      %404 = vmatpush1.msra.mxu0 0.0
      %405 = vmatprep.subr.mxu0 0.0
      %406 = vmatpush1.msra.mxu0 0.0
      %407 = vmatprep.subr.mxu0 0.0
      %408 = vmatpush1.msra.mxu0 0.0
      %409 = vmatprep.subr.mxu0 0.0
      %410 = vmatpush1.msra.mxu0 0.0
      %411 = vmatprep.subr.mxu0 0.0
      %412 = vmatpush1.msra.mxu0 0.0
      %413 = vmatprep.subr.mxu0 0.0
      %414 = vmatpush1.msra.mxu0 0.0
      %415 = vmatprep.subr.mxu0 0.0
      %416 = vmatpush1.msra.mxu0 0.0
      %417 = vmatprep.subr.mxu0 0.0
      %418 = vmatpush1.msra.mxu0 0.0
      %419 = vmatprep.mubr.f32.mxu0 0.0
      %420 = vmatmul.mubr.f32.gmra.mrb[0].mxu0 %v343
      %v421 = vpop.f32.mrb[0].mxu0
      %v422 = vadd.f32 %v331, %v421
      %v423 = vpop.f32.mrb[0].mxu0
      %v424 = vadd.f32 %v331, %v423
      %425 = vmatprep.mubr.f32.mxu0 0.0
      %426 = vmatmul.mubr.f32.gmra.mrb[0].mxu0 %v345
      %v427 = vpop.f32.mrb[0].mxu0
      %v428 = vadd.f32 %v336, %v427
      %v429 = vpop.f32.mrb[0].mxu0
      %v430 = vadd.f32 %v336, %v429
      %431 = vmatprep.mubr.f32.mxu0 0.0
      %432 = vmatmul.mubr.f32.gmra.mrb[0].mxu0 %v347
      %v433 = vpop.f32.mrb[0].mxu0
      %v434 = vadd.f32 %v341, %v433
      %v435 = vpop.f32.mrb[0].mxu0
      %v436 = vadd.f32 %v341, %v435
      %437 = vdwg.mxu0
      %v438 = vtanh.pop %v422
      %v439 = vtanh.pop %v424
      %v440 = vtanh.pop %v428
      %v441 = vtanh.pop %v430
      %v442 = vtanh.pop %v434
      %v443 = vtanh.pop %v436
      %v444 = vld [vmem:[%s1 + $0x48] sm:$0xff]
      %v445 = vld [vmem:[%s1 + $0x50] sm:$0xff]
      %v446 = vld [vmem:[%s1 + $0x58] sm:$0xf]
      %448 = vset.pattern.permute.xlu0 20
      %449 = vperm.xlu0 %448, %v444
      %v450 = vpop.permute.xlu0 %449
      %453 = vset.pattern.permute.xlu0 20
      %454 = vperm.xlu0 %453, %v445
      %v455 = vpop.permute.xlu0 %454
      %458 = vset.pattern.permute.xlu0 20
      %459 = vperm.xlu0 %458, %v446
      %v460 = vpop.permute.xlu0 %459
      %v462 = vsel %vm222, %v444, 0
      %v464 = vsel %vm222, %v445, 0
      %v466 = vsel %vm222, %v446, 0
      %v469 = vsel %vm229, %v442, 0
      %v472 = vsel %vm229, %v443, 0
      %474 = vmatprep.subr.mxu0 %v439
      %475 = vmatpush1.msra.mxu0 %v438
      %476 = vmatprep.subr.mxu0 %v441
      %477 = vmatpush1.msra.mxu0 %v440
      %478 = vmatprep.subr.mxu0 %v472
      %479 = vmatpush1.msra.mxu0 %v469
      %480 = vmatprep.subr.mxu0 0.0
      %481 = vmatpush1.msra.mxu0 0.0
      %482 = vmatprep.subr.mxu0 0.0
      %483 = vmatpush1.msra.mxu0 0.0
      %484 = vmatprep.subr.mxu0 0.0
      %485 = vmatpush1.msra.mxu0 0.0
      %486 = vmatprep.subr.mxu0 0.0
      %487 = vmatpush1.msra.mxu0 0.0
      %488 = vmatprep.subr.mxu0 0.0
      %489 = vmatpush1.msra.mxu0 0.0
      %490 = vmatprep.subr.mxu0 0.0
      %491 = vmatpush1.msra.mxu0 0.0
      %492 = vmatprep.subr.mxu0 0.0
      %493 = vmatpush1.msra.mxu0 0.0
      %494 = vmatprep.subr.mxu0 0.0
      %495 = vmatpush1.msra.mxu0 0.0
      %496 = vmatprep.subr.mxu0 0.0
      %497 = vmatpush1.msra.mxu0 0.0
      %498 = vmatprep.subr.mxu0 0.0
      %499 = vmatpush1.msra.mxu0 0.0
      %500 = vmatprep.subr.mxu0 0.0
      %501 = vmatpush1.msra.mxu0 0.0
      %502 = vmatprep.subr.mxu0 0.0
      %503 = vmatpush1.msra.mxu0 0.0
      %504 = vmatprep.subr.mxu0 0.0
      %505 = vmatpush1.msra.mxu0 0.0
      %506 = vmatprep.subr.mxu0 0.0
      %507 = vmatpush1.msra.mxu0 0.0
      %508 = vmatprep.subr.mxu0 0.0
      %509 = vmatpush1.msra.mxu0 0.0
      %510 = vmatprep.subr.mxu0 0.0
      %511 = vmatpush1.msra.mxu0 0.0
      %512 = vmatprep.subr.mxu0 0.0
      %513 = vmatpush1.msra.mxu0 0.0
      %514 = vmatprep.subr.mxu0 0.0
      %515 = vmatpush1.msra.mxu0 0.0
      %516 = vmatprep.subr.mxu0 0.0
      %517 = vmatpush1.msra.mxu0 0.0
      %518 = vmatprep.subr.mxu0 0.0
      %519 = vmatpush1.msra.mxu0 0.0
      %520 = vmatprep.subr.mxu0 0.0
      %521 = vmatpush1.msra.mxu0 0.0
      %522 = vmatprep.subr.mxu0 0.0
      %523 = vmatpush1.msra.mxu0 0.0
      %524 = vmatprep.subr.mxu0 0.0
      %525 = vmatpush1.msra.mxu0 0.0
      %526 = vmatprep.subr.mxu0 0.0
      %527 = vmatpush1.msra.mxu0 0.0
      %528 = vmatprep.subr.mxu0 0.0
      %529 = vmatpush1.msra.mxu0 0.0
      %530 = vmatprep.subr.mxu0 0.0
      %531 = vmatpush1.msra.mxu0 0.0
      %532 = vmatprep.subr.mxu0 0.0
      %533 = vmatpush1.msra.mxu0 0.0
      %534 = vmatprep.subr.mxu0 0.0
      %535 = vmatpush1.msra.mxu0 0.0
      %536 = vmatprep.subr.mxu0 0.0
      %537 = vmatpush1.msra.mxu0 0.0
      %538 = vmatprep.mubr.f32.mxu0 0.0
      %539 = vmatmul.mubr.f32.gmra.mrb[0].mxu0 %v462
      %v540 = vpop.f32.mrb[0].mxu0
      %v541 = vadd.f32 %v450, %v540
      %v542 = vpop.f32.mrb[0].mxu0
      %v543 = vadd.f32 %v450, %v542
      %544 = vmatprep.mubr.f32.mxu0 0.0
      %545 = vmatmul.mubr.f32.gmra.mrb[0].mxu0 %v464
      %v546 = vpop.f32.mrb[0].mxu0
      %v547 = vadd.f32 %v455, %v546
      %v548 = vpop.f32.mrb[0].mxu0
      %v549 = vadd.f32 %v455, %v548
      %550 = vmatprep.mubr.f32.mxu0 0.0
      %551 = vmatmul.mubr.f32.gmra.mrb[0].mxu0 %v466
      %v552 = vpop.f32.mrb[0].mxu0
      %v553 = vadd.f32 %v460, %v552
      %v554 = vpop.f32.mrb[0].mxu0
      %v555 = vadd.f32 %v460, %v554
      %556 = vdwg.mxu0
      %v557 = vtanh.pop %v541
      %v558 = vtanh.pop %v543
      %v559 = vtanh.pop %v547
      %v560 = vtanh.pop %v549
      %v561 = vtanh.pop %v553
      %v562 = vtanh.pop %v555
      %v563 = vld [vmem:[%s1 + $0x60] sm:$0xff]
      %565 = vset.pattern.permute.xlu0 20
      %566 = vperm.xlu0 %565, %v563
      %v567 = vpop.permute.xlu0 %566
      %v569 = vsel %vm222, %v563, 0
      %v572 = vsel %vm229, %v561, 0
      %v575 = vsel %vm229, %v562, 0
      %577 = vmatprep.subr.mxu0 %v558
      %578 = vmatpush1.msra.mxu0 %v557
      %579 = vmatprep.subr.mxu0 %v560
      %580 = vmatpush1.msra.mxu0 %v559
      %581 = vmatprep.subr.mxu0 %v575
      %582 = vmatpush1.msra.mxu0 %v572
      %583 = vmatprep.subr.mxu0 0.0
      %584 = vmatpush1.msra.mxu0 0.0
      %585 = vmatprep.subr.mxu0 0.0
      %586 = vmatpush1.msra.mxu0 0.0
      %587 = vmatprep.subr.mxu0 0.0
      %588 = vmatpush1.msra.mxu0 0.0
      %589 = vmatprep.subr.mxu0 0.0
      %590 = vmatpush1.msra.mxu0 0.0
      %591 = vmatprep.subr.mxu0 0.0
      %592 = vmatpush1.msra.mxu0 0.0
      %593 = vmatprep.subr.mxu0 0.0
      %594 = vmatpush1.msra.mxu0 0.0
      %595 = vmatprep.subr.mxu0 0.0
      %596 = vmatpush1.msra.mxu0 0.0
      %597 = vmatprep.subr.mxu0 0.0
      %598 = vmatpush1.msra.mxu0 0.0
      %599 = vmatprep.subr.mxu0 0.0
      %600 = vmatpush1.msra.mxu0 0.0
      %601 = vmatprep.subr.mxu0 0.0
      %602 = vmatpush1.msra.mxu0 0.0
      %603 = vmatprep.subr.mxu0 0.0
      %604 = vmatpush1.msra.mxu0 0.0
      %605 = vmatprep.subr.mxu0 0.0
      %606 = vmatpush1.msra.mxu0 0.0
      %607 = vmatprep.subr.mxu0 0.0
      %608 = vmatpush1.msra.mxu0 0.0
      %609 = vmatprep.subr.mxu0 0.0
      %610 = vmatpush1.msra.mxu0 0.0
      %611 = vmatprep.subr.mxu0 0.0
      %612 = vmatpush1.msra.mxu0 0.0
      %613 = vmatprep.subr.mxu0 0.0
      %614 = vmatpush1.msra.mxu0 0.0
      %615 = vmatprep.subr.mxu0 0.0
      %616 = vmatpush1.msra.mxu0 0.0
      %617 = vmatprep.subr.mxu0 0.0
      %618 = vmatpush1.msra.mxu0 0.0
      %619 = vmatprep.subr.mxu0 0.0
      %620 = vmatpush1.msra.mxu0 0.0
      %621 = vmatprep.subr.mxu0 0.0
      %622 = vmatpush1.msra.mxu0 0.0
      %623 = vmatprep.subr.mxu0 0.0
      %624 = vmatpush1.msra.mxu0 0.0
      %625 = vmatprep.subr.mxu0 0.0
      %626 = vmatpush1.msra.mxu0 0.0
      %627 = vmatprep.subr.mxu0 0.0
      %628 = vmatpush1.msra.mxu0 0.0
      %629 = vmatprep.subr.mxu0 0.0
      %630 = vmatpush1.msra.mxu0 0.0
      %631 = vmatprep.subr.mxu0 0.0
      %632 = vmatpush1.msra.mxu0 0.0
      %633 = vmatprep.subr.mxu0 0.0
      %634 = vmatpush1.msra.mxu0 0.0
      %635 = vmatprep.subr.mxu0 0.0
      %636 = vmatpush1.msra.mxu0 0.0
      %637 = vmatprep.subr.mxu0 0.0
      %638 = vmatpush1.msra.mxu0 0.0
      %639 = vmatprep.subr.mxu0 0.0
      %640 = vmatpush1.msra.mxu0 0.0
      %641 = vmatprep.mubr.f32.mxu0 0.0
      %642 = vmatmul.mubr.f32.gmra.mrb[0].mxu0 %v569
      %v643 = vpop.f32.mrb[0].mxu0
      %v644 = vadd.f32 %v567, %v643
      %v645 = vpop.f32.mrb[0].mxu0
      %v646 = vadd.f32 %v567, %v645
      %647 = vdwg.mxu0
      %648 = vst [vmem:[%s142] sm:$0xff] %v644
      %649 = vst [vmem:[%s142 + $0x8] sm:$0xff] %v646
      %s650 = smul.u32 2, %s13
      %p651 = scmp.lt.s32.totalorder %s650, 3
      %s652 = scalar_select %p651, %s650, 3
      %s653 = smul.addr %s652, 8
      %s654 = scalar_lea.vmem %s2, %s653
      // Predicated region
      $region29: #{sihcrd_forward.1} parent=27 // pred_check
        %p655 = pneg %p78
      $region30: #{sihcrd_forward.1} parent=27 // pred_check_branch
        %657 = sbr.rel (%p655) target = $region32
      $region31: #{sihcrd_forward.1} parent=27 // pred_region
        %s658 = smul.u32 2, %s13
      $region32: #{sihcrd_forward.1} parent=27 // pred_fallthru
        _
    $region28: #{sihcrd_forward.1} parent=5 // pred_fallthru
      _
    %p659 = scmp.le.s32.totalorder 2, %s8
    // Predicated region
    $region33: #{sihcrd_forward.1} parent=5 // pred_check
      %p660 = pneg %p659
    $region34: #{sihcrd_forward.1} parent=5 // pred_check_branch
      %662 = sbr.rel (%p660) target = $region36
    $region35: #{sihcrd_forward.1} parent=5 // pred_region
      %s663 = ssub.s32 %s8, 2
      // Predicated region
      $region37: #{sihcrd_forward.1} parent=35 // pred_check
        %p664 = pneg %p84
      $region38: #{sihcrd_forward.1} parent=35 // pred_check_branch
        %666 = sbr.rel (%p664) target = $region40
      $region39: #{sihcrd_forward.1} parent=35 // pred_region
        %s667 = smul.u32 2, %s14
        %p668 = scmp.lt.s32.totalorder %s667, 3
        %s669 = scalar_select %p668, %s667, 3
        %s670 = smul.addr %s669, 8
        %s671 = scalar_lea.vmem %s2, %s670
      $region40: #{sihcrd_forward.1} parent=35 // pred_fallthru
        _
    $region36: #{sihcrd_forward.1} parent=5 // pred_fallthru
      _
  $region6: #{sihcrd_forward.1} parent=0 // loop_footer
    %s12 = sadd.s32 1, %s8
  $region7: #{sihcrd_forward.1} parent=0 // loop_footer_branch
    %7 = sbr.rel target = $region3
  $region8: #{sihcrd_forward.1} parent=0 // loop_exit
    _

</llo_original>
